<compile_context>
chip_gen: v5e
topology: v5e:2x2
jax: 0.10.0
libtpu: 0.0.40
codegen_flags: <defaults>
</compile_context>

<pallas_src>
import jax
import jax.numpy as jnp
from jax.experimental import pallas as pl
from jax.experimental.pallas import tpu as pltpu


def head_kernel(x_ref, w_ref, b_ref, o_ref):
    # x_ref: (TN, HW, C)  channel-minor activations (C on lanes)
    # w_ref: (C, F)       weight pre-transposed + pre-scaled by 1/(H*W)
    # b_ref: (1, F)
    # o_ref: (TN, F)
    # AdaptiveAvgPool2d((1,1)) + Flatten == sum over spatial; mean divisor is
    # folded into the weight.  Accumulate in f32 even for bf16 activations.
    pooled = jnp.sum(x_ref[...].astype(jnp.float32), axis=1)      # (TN, C), sublane/VPU reduce
    # Dropout is identity in eval mode.
    out = jnp.dot(pooled, w_ref[...],                             # (TN, C) @ (C, F) on MXU
                  preferred_element_type=jnp.float32)
    o_ref[...] = (out + b_ref[...]).astype(o_ref.dtype)


def model_head(feat_nhwc, weight, bias, *, tile_n=16, out_dtype=jnp.float32):
    """Head of `Model`.

    feat_nhwc: (N, H, W, C) backbone features, channel-minor (free on TPU).
    weight:    (F, C) torch-layout Linear weight.
    bias:      (F,)   Linear bias.
    """
    N, H, W, C = feat_nhwc.shape
    F = weight.shape[0]
    HW = H * W

    # Free reshape (no transpose, no extra HBM traffic): NHWC -> (N, H*W, C).
    x = feat_nhwc.reshape(N, HW, C)
    # One-time (128 KiB) trace-time transform of the tiny weight: fold the mean
    # divisor and transpose to (C, F) so the kernel contraction is K-major.
    w_scaled = (weight.astype(jnp.float32) * (1.0 / HW)).T        # (C, F)
    b2 = bias.reshape(1, F).astype(jnp.float32)

    # Batch tile.  tn == N when small (output block 2nd-last dim == full dim),
    # otherwise tile_n (multiple of 8 recommended; 16 by default).
    tn = N if N <= tile_n else tile_n
    grid = (pl.cdiv(N, tn),)

    # --- real (padded) VMEM footprint -> explicit scoped-VMEM limit ----------
    x_item = jnp.dtype(feat_nhwc.dtype).itemsize
    o_item = jnp.dtype(out_dtype).itemsize
    sub = 8 * max(1, 4 // x_item)                    # sublane granule: f32->8, bf16->16
    hw_pad = ((HW + sub - 1) // sub) * sub
    f_pad = ((F + 127) // 128) * 128
    c_pad = ((C + 127) // 128) * 128
    act_bytes = 2 * tn * hw_pad * c_pad * x_item     # double-buffered activation tiles
    w_bytes = 2 * C * f_pad * 4                      # resident weight (conservatively x2)
    b_bytes = 2 * 8 * f_pad * 4
    o_bytes = 2 * max(tn, 8) * f_pad * o_item
    vmem_limit = int(act_bytes + w_bytes + b_bytes + o_bytes + (4 << 20))
    vmem_limit = min(vmem_limit, 100 << 20)          # stay well under physical VMEM

    # Advisory cost: this head is a multi-MB HBM read with negligible compute.
    bytes_accessed = int(N * HW * C * x_item + C * F * 4 + F * 4 + N * F * o_item)
    cost = pl.CostEstimate(flops=int(2 * N * C * F + N * HW * C),
                           transcendentals=0,
                           bytes_accessed=bytes_accessed)

    return pl.pallas_call(
        head_kernel,
        out_shape=jax.ShapeDtypeStruct((N, F), out_dtype),
        grid_spec=pltpu.PrefetchScalarGridSpec(
            num_scalar_prefetch=0,
            grid=grid,
            in_specs=[
                pl.BlockSpec((tn, HW, C), lambda i: (i, 0, 0)),   # pipelined activation tiles
                pl.BlockSpec((C, F), lambda i: (0, 0)),           # resident weight
                pl.BlockSpec((1, F), lambda i: (0, 0)),           # resident bias
            ],
            out_specs=pl.BlockSpec((tn, F), lambda i: (i, 0)),
        ),
        compiler_params=pltpu.CompilerParams(
            dimension_semantics=("parallel",),        # both TensorCores on v7x
            vmem_limit_bytes=vmem_limit,
        ),
        cost_estimate=cost,
    )(x, w_scaled, b2)


if __name__ == "__main__":
    # Small, forward-consistent shapes: batch=2, backbone feature map 7x7x2048
    # (channel-minor), out_features=16 (Linear in_features=2048 is hard-coded
    # in the module).
    N, C, H, W, OUT = 2, 2048, 7, 7, 16

    key = jax.random.PRNGKey(0)
    k_x, k_w, k_b = jax.random.split(key, 3)
    # Backbone emits channel-minor features; feed them in bf16 (DMA-bound head).
    feat = jax.random.normal(k_x, (N, H, W, C), dtype=jnp.float32).astype(jnp.bfloat16)
    # Deterministic "Linear(2048, OUT)" parameters (torch layout: (out, in)).
    weight = jax.random.normal(k_w, (OUT, C), dtype=jnp.float32) * 0.02
    bias = jax.random.normal(k_b, (OUT,), dtype=jnp.float32) * 0.01

    out = model_head(feat, weight, bias)
    out = jax.block_until_ready(out)

    # Sanity check against plain-JAX reference of the same head (same bf16 input).
    ref = jnp.mean(feat.astype(jnp.float32), axis=(1, 2)) @ weight.T + bias
    assert out.shape == (N, OUT)
    assert jnp.allclose(out, ref, atol=1e-3, rtol=1e-3)

    print("KERNEL_OK")
</pallas_src>

<mosaic_0001>
module attributes {stable_mosaic.version = 11 : i64} {
  func.func @head_kernel(%arg0: i32, %arg1: memref<2x49x2048xbf16, #tpu.memory_space<vmem>>, %arg2: memref<2048x16xf32, #tpu.memory_space<vmem>>, %arg3: memref<1x16xf32, #tpu.memory_space<vmem>>, %arg4: memref<2x16xf32, #tpu.memory_space<vmem>>) attributes {dimension_semantics = [#tpu.dimension_semantics<parallel>], iteration_bounds = array<i64: 1>, scalar_prefetch = 0 : i64, scratch_operands = 0 : i64, tpu.core_type = #tpu.core_type<tc>, window_params = [{transform_indices = @transform_0, window_bounds = array<i64: 2, 49, 2048>}, {pipeline_mode = #tpu.pipeline_mode<synchronous>, transform_indices = @transform_1, window_bounds = array<i64: 2048, 16>}, {pipeline_mode = #tpu.pipeline_mode<synchronous>, transform_indices = @transform_2, window_bounds = array<i64: 1, 16>}, {transform_indices = @transform_3, window_bounds = array<i64: 2, 16>}]} {
    %c0 = arith.constant 0 : index
    %c0_0 = arith.constant 0 : index
    %c0_1 = arith.constant 0 : index
    %0 = vector.load %arg1[%c0, %c0_0, %c0_1] : memref<2x49x2048xbf16, #tpu.memory_space<vmem>>, vector<2x49x2048xbf16>
    %1 = arith.extf %0 : vector<2x49x2048xbf16> to vector<2x49x2048xf32>
    %cst = arith.constant dense<0.000000e+00> : vector<2x2048xf32>
    %2 = vector.multi_reduction <add>, %1, %cst [1] : vector<2x49x2048xf32> to vector<2x2048xf32>
    %c0_2 = arith.constant 0 : index
    %c0_3 = arith.constant 0 : index
    %3 = vector.load %arg2[%c0_2, %c0_3] : memref<2048x16xf32, #tpu.memory_space<vmem>>, vector<2048x16xf32>
    %cst_4 = arith.constant dense<0.000000e+00> : vector<2x16xf32>
    %4 = tpu.matmul %2, %3, %cst_4 {dimension_numbers = #tpu.dot_dimension_numbers<[1], [0], [0], [1], [0, 0, 1, 1], [], []>} : vector<2x2048xf32>, vector<2048x16xf32>, vector<2x16xf32> -> vector<2x16xf32>
    %c0_5 = arith.constant 0 : index
    %c0_6 = arith.constant 0 : index
    %5 = vector.load %arg3[%c0_5, %c0_6] : memref<1x16xf32, #tpu.memory_space<vmem>>, vector<1x16xf32>
    %6 = vector.broadcast %5 : vector<1x16xf32> to vector<2x16xf32>
    %7 = arith.addf %4, %6 : vector<2x16xf32>
    %c0_7 = arith.constant 0 : index
    %c0_8 = arith.constant 0 : index
    %8 = vector.load %arg4[%c0_7, %c0_8] : memref<2x16xf32, #tpu.memory_space<vmem>>, vector<2x16xf32>
    tpu.vector_store %arg4[%c0_7, %c0_8], %7 {strides = array<i32>} : memref<2x16xf32, #tpu.memory_space<vmem>>, vector<2x16xf32>,
    return
  }
  func.func @transform_0(%arg0: i32) -> (i32, i32, i32) {
    %c0_i32 = arith.constant 0 : i32
    %c0_i32_0 = arith.constant 0 : i32
    %c0_i32_1 = arith.constant 0 : i32
    return %arg0, %c0_i32, %c0_i32_0 : i32, i32, i32
  }
  func.func @transform_1(%arg0: i32) -> (i32, i32) {
    %c0_i32 = arith.constant 0 : i32
    %c0_i32_0 = arith.constant 0 : i32
    %c0_i32_1 = arith.constant 0 : i32
    return %c0_i32, %c0_i32_0 : i32, i32
  }
  func.func @transform_2(%arg0: i32) -> (i32, i32) {
    %c0_i32 = arith.constant 0 : i32
    %c0_i32_0 = arith.constant 0 : i32
    %c0_i32_1 = arith.constant 0 : i32
    return %c0_i32, %c0_i32_0 : i32, i32
  }
  func.func @transform_3(%arg0: i32) -> (i32, i32) {
    %c0_i32 = arith.constant 0 : i32
    %c0_i32_0 = arith.constant 0 : i32
    return %arg0, %c0_i32 : i32, i32
  }
}

</mosaic_0001>

<llo_original>
// kernel: tpu_custom_call.1
$region0: #{tpu_custom_call.1}
  #allocation0 [shape = 'u32[]', space=smem, size = 0x4, offset = 0x4, fixed_abs, tag = 'smem constant byte address 0x4 - core index']
  #allocation1 [shape = 'u32[72,128]{1,0:T(1,128)}', space=vmem, size = 0x9000, scoped, tag = 'internal scratch']
  %s0 = inlined_call_operand.vmem [shape: bf16[2,49,2048], index: 0, kind: input, shape index: {}]
  %s1 = inlined_call_operand.vmem [shape: f32[2048,16], index: 1, kind: input, shape index: {}]
  %s2 = inlined_call_operand.vmem [shape: f32[1,16], index: 2, kind: input, shape index: {}]
  %s3 = inlined_call_operand.hbm [shape: f32[2,16], index: 3, kind: output, shape index: {}]
  %s4 = sld [smem:[#allocation0]]
  $region22: #{tpu_custom_call.1} parent=0
    _
  %s6 = ssub.s32 1, %s4
  %s7 = scalar_select 0, %s6, %s4
  $region1: #{tpu_custom_call.1} parent=0
    #allocation2 [shape = 'u8[1024]{0}', space=vmem, size = 0x400, scoped, tag = 'output window, operand 0, single buffered']
    #allocation3 [shape = 's32[1]{0}', space=sflag, size = 0x4, scoped, tag = 'scoped memory for tpu_custom_call.1']
    %8 = vsyncpa [#allocation3], 0
    // Predicated region
    $region2: #{tpu_custom_call.1} parent=1 // pred_check
      _
    $region3: #{tpu_custom_call.1} parent=1 // pred_check_branch
      %10 = sbr.rel (0) target = $region5
    $region4: #{tpu_custom_call.1} parent=1 // pred_region
      _
    $region5: #{tpu_custom_call.1} parent=1 // pred_fallthru
      _
    // Predicated region
    $region6: #{tpu_custom_call.1} parent=1 // pred_check
      _
    $region7: #{tpu_custom_call.1} parent=1 // pred_check_branch
      %12 = sbr.rel (0) target = $region9
    $region8: #{tpu_custom_call.1} parent=1 // pred_region
      _
    $region9: #{tpu_custom_call.1} parent=1 // pred_fallthru
      _
    // Predicated region
    $region10: #{tpu_custom_call.1} parent=1 // pred_check
      _
    $region11: #{tpu_custom_call.1} parent=1 // pred_check_branch
      %14 = sbr.rel (0) target = $region13
    $region12: #{tpu_custom_call.1} parent=1 // pred_region
      _
    $region13: #{tpu_custom_call.1} parent=1 // pred_fallthru
      _
    %v15 = vld [vmem:[%s0] sm:$0xff]
    %v16 = vld [vmem:[%s0 + $0x8] sm:$0xff]
    %v17 = vld [vmem:[%s0 + $0x10] sm:$0xff]
    %v18 = vld [vmem:[%s0 + $0x18] sm:$0xff]
    %v19 = vld [vmem:[%s0 + $0x20] sm:$0xff]
    %v20 = vld [vmem:[%s0 + $0x28] sm:$0xff]
    %v21 = vld [vmem:[%s0 + $0x30] sm:$0xff]
    %v22 = vld [vmem:[%s0 + $0x38] sm:$0xff]
    %v23 = vld [vmem:[%s0 + $0x40] sm:$0xff]
    %v24 = vld [vmem:[%s0 + $0x48] sm:$0xff]
    %v25 = vld [vmem:[%s0 + $0x50] sm:$0xff]
    %v26 = vld [vmem:[%s0 + $0x58] sm:$0xff]
    %v27 = vld [vmem:[%s0 + $0x60] sm:$0xff]
    %v28 = vld [vmem:[%s0 + $0x68] sm:$0xff]
    %v29 = vld [vmem:[%s0 + $0x70] sm:$0xff]
    %v30 = vld [vmem:[%s0 + $0x78] sm:$0xff]
    %v31 = vld [vmem:[%s0 + $0x80] sm:$0xff]
    %v32 = vld [vmem:[%s0 + $0x88] sm:$0xff]
    %v33 = vld [vmem:[%s0 + $0x90] sm:$0xff]
    %v34 = vld [vmem:[%s0 + $0x98] sm:$0xff]
    %v35 = vld [vmem:[%s0 + $0xa0] sm:$0xff]
    %v36 = vld [vmem:[%s0 + $0xa8] sm:$0xff]
    %v37 = vld [vmem:[%s0 + $0xb0] sm:$0xff]
    %v38 = vld [vmem:[%s0 + $0xb8] sm:$0xff]
    %v39 = vld [vmem:[%s0 + $0xc0] sm:$0xff]
    %v40 = vld [vmem:[%s0 + $0xc8] sm:$0xff]
    %v41 = vld [vmem:[%s0 + $0xd0] sm:$0xff]
    %v42 = vld [vmem:[%s0 + $0xd8] sm:$0xff]
    %v43 = vld [vmem:[%s0 + $0xe0] sm:$0xff]
    %v44 = vld [vmem:[%s0 + $0xe8] sm:$0xff]
    %v45 = vld [vmem:[%s0 + $0xf0] sm:$0xff]
    %v46 = vld [vmem:[%s0 + $0xf8] sm:$0xff]
    %v47 = vld [vmem:[%s0 + $0x100] sm:$0xff]
    %v48 = vld [vmem:[%s0 + $0x108] sm:$0xff]
    %v49 = vld [vmem:[%s0 + $0x110] sm:$0xff]
    %v50 = vld [vmem:[%s0 + $0x118] sm:$0xff]
    %v51 = vld [vmem:[%s0 + $0x120] sm:$0xff]
    %v52 = vld [vmem:[%s0 + $0x128] sm:$0xff]
    %v53 = vld [vmem:[%s0 + $0x130] sm:$0xff]
    %v54 = vld [vmem:[%s0 + $0x138] sm:$0xff]
    %v55 = vld [vmem:[%s0 + $0x140] sm:$0xff]
    %v56 = vld [vmem:[%s0 + $0x148] sm:$0xff]
    %v57 = vld [vmem:[%s0 + $0x150] sm:$0xff]
    %v58 = vld [vmem:[%s0 + $0x158] sm:$0xff]
    %v59 = vld [vmem:[%s0 + $0x160] sm:$0xff]
    %v60 = vld [vmem:[%s0 + $0x168] sm:$0xff]
    %v61 = vld [vmem:[%s0 + $0x170] sm:$0xff]
    %v62 = vld [vmem:[%s0 + $0x178] sm:$0xff]
    %v63 = vld [vmem:[%s0 + $0x180] sm:$0x11]
    %v64 = vld [vmem:[%s0 + $0x188] sm:$0x11]
    %v65 = vld [vmem:[%s0 + $0x190] sm:$0x11]
    %v66 = vld [vmem:[%s0 + $0x198] sm:$0x11]
    %v67 = vld [vmem:[%s0 + $0x1a0] sm:$0x11]
    %v68 = vld [vmem:[%s0 + $0x1a8] sm:$0x11]
    %v69 = vld [vmem:[%s0 + $0x1b0] sm:$0x11]
    %v70 = vld [vmem:[%s0 + $0x1b8] sm:$0x11]
    %v71 = vld [vmem:[%s0 + $0x1c0] sm:$0xff]
    %v72 = vld [vmem:[%s0 + $0x1c8] sm:$0xff]
    %v73 = vld [vmem:[%s0 + $0x1d0] sm:$0xff]
    %v74 = vld [vmem:[%s0 + $0x1d8] sm:$0xff]
    %v75 = vld [vmem:[%s0 + $0x1e0] sm:$0xff]
    %v76 = vld [vmem:[%s0 + $0x1e8] sm:$0xff]
    %v77 = vld [vmem:[%s0 + $0x1f0] sm:$0xff]
    %v78 = vld [vmem:[%s0 + $0x1f8] sm:$0xff]
    %v79 = vld [vmem:[%s0 + $0x200] sm:$0xff]
    %v80 = vld [vmem:[%s0 + $0x208] sm:$0xff]
    %v81 = vld [vmem:[%s0 + $0x210] sm:$0xff]
    %v82 = vld [vmem:[%s0 + $0x218] sm:$0xff]
    %v83 = vld [vmem:[%s0 + $0x220] sm:$0xff]
    %v84 = vld [vmem:[%s0 + $0x228] sm:$0xff]
    %v85 = vld [vmem:[%s0 + $0x230] sm:$0xff]
    %v86 = vld [vmem:[%s0 + $0x238] sm:$0xff]
    %v87 = vld [vmem:[%s0 + $0x240] sm:$0xff]
    %v88 = vld [vmem:[%s0 + $0x248] sm:$0xff]
    %v89 = vld [vmem:[%s0 + $0x250] sm:$0xff]
    %v90 = vld [vmem:[%s0 + $0x258] sm:$0xff]
    %v91 = vld [vmem:[%s0 + $0x260] sm:$0xff]
    %v92 = vld [vmem:[%s0 + $0x268] sm:$0xff]
    %v93 = vld [vmem:[%s0 + $0x270] sm:$0xff]
    %v94 = vld [vmem:[%s0 + $0x278] sm:$0xff]
    %v95 = vld [vmem:[%s0 + $0x280] sm:$0xff]
    %v96 = vld [vmem:[%s0 + $0x288] sm:$0xff]
    %v97 = vld [vmem:[%s0 + $0x290] sm:$0xff]
    %v98 = vld [vmem:[%s0 + $0x298] sm:$0xff]
    %v99 = vld [vmem:[%s0 + $0x2a0] sm:$0xff]
    %v100 = vld [vmem:[%s0 + $0x2a8] sm:$0xff]
    %v101 = vld [vmem:[%s0 + $0x2b0] sm:$0xff]
    %v102 = vld [vmem:[%s0 + $0x2b8] sm:$0xff]
    %v103 = vld [vmem:[%s0 + $0x2c0] sm:$0xff]
    %v104 = vld [vmem:[%s0 + $0x2c8] sm:$0xff]
    %v105 = vld [vmem:[%s0 + $0x2d0] sm:$0xff]
    %v106 = vld [vmem:[%s0 + $0x2d8] sm:$0xff]
    %v107 = vld [vmem:[%s0 + $0x2e0] sm:$0xff]
    %v108 = vld [vmem:[%s0 + $0x2e8] sm:$0xff]
    %v109 = vld [vmem:[%s0 + $0x2f0] sm:$0xff]
    %v110 = vld [vmem:[%s0 + $0x2f8] sm:$0xff]
    %v111 = vld [vmem:[%s0 + $0x300] sm:$0xff]
    %v112 = vld [vmem:[%s0 + $0x308] sm:$0xff]
    %v113 = vld [vmem:[%s0 + $0x310] sm:$0xff]
    %v114 = vld [vmem:[%s0 + $0x318] sm:$0xff]
    %v115 = vld [vmem:[%s0 + $0x320] sm:$0xff]
    %v116 = vld [vmem:[%s0 + $0x328] sm:$0xff]
    %v117 = vld [vmem:[%s0 + $0x330] sm:$0xff]
    %v118 = vld [vmem:[%s0 + $0x338] sm:$0xff]
    %v119 = vld [vmem:[%s0 + $0x340] sm:$0x11]
    %v120 = vld [vmem:[%s0 + $0x348] sm:$0x11]
    %v121 = vld [vmem:[%s0 + $0x350] sm:$0x11]
    %v122 = vld [vmem:[%s0 + $0x358] sm:$0x11]
    %v123 = vld [vmem:[%s0 + $0x360] sm:$0x11]
    %v124 = vld [vmem:[%s0 + $0x368] sm:$0x11]
    %v125 = vld [vmem:[%s0 + $0x370] sm:$0x11]
    %v126 = vld [vmem:[%s0 + $0x378] sm:$0x11]
    %v127 = vunpack.c.l.bf16 %v15
    %v128 = vunpack.c.h.bf16 %v15
    %v129 = vunpack.c.l.bf16 %v16
    %v130 = vunpack.c.h.bf16 %v16
    %v131 = vunpack.c.l.bf16 %v17
    %v132 = vunpack.c.h.bf16 %v17
    %v133 = vunpack.c.l.bf16 %v18
    %v134 = vunpack.c.h.bf16 %v18
    %v135 = vunpack.c.l.bf16 %v19
    %v136 = vunpack.c.h.bf16 %v19
    %v137 = vunpack.c.l.bf16 %v20
    %v138 = vunpack.c.h.bf16 %v20
    %v139 = vunpack.c.l.bf16 %v21
    %v140 = vunpack.c.h.bf16 %v21
    %v141 = vunpack.c.l.bf16 %v22
    %v142 = vunpack.c.h.bf16 %v22
    %v143 = vunpack.c.l.bf16 %v23
    %v144 = vunpack.c.h.bf16 %v23
    %v145 = vunpack.c.l.bf16 %v24
    %v146 = vunpack.c.h.bf16 %v24
    %v147 = vunpack.c.l.bf16 %v25
    %v148 = vunpack.c.h.bf16 %v25
    %v149 = vunpack.c.l.bf16 %v26
    %v150 = vunpack.c.h.bf16 %v26
    %v151 = vunpack.c.l.bf16 %v27
    %v152 = vunpack.c.h.bf16 %v27
    %v153 = vunpack.c.l.bf16 %v28
    %v154 = vunpack.c.h.bf16 %v28
    %v155 = vunpack.c.l.bf16 %v29
    %v156 = vunpack.c.h.bf16 %v29
    %v157 = vunpack.c.l.bf16 %v30
    %v158 = vunpack.c.h.bf16 %v30
    %v159 = vunpack.c.l.bf16 %v31
    %v160 = vunpack.c.h.bf16 %v31
    %v161 = vunpack.c.l.bf16 %v32
    %v162 = vunpack.c.h.bf16 %v32
    %v163 = vunpack.c.l.bf16 %v33
    %v164 = vunpack.c.h.bf16 %v33
    %v165 = vunpack.c.l.bf16 %v34
    %v166 = vunpack.c.h.bf16 %v34
    %v167 = vunpack.c.l.bf16 %v35
    %v168 = vunpack.c.h.bf16 %v35
    %v169 = vunpack.c.l.bf16 %v36
    %v170 = vunpack.c.h.bf16 %v36
    %v171 = vunpack.c.l.bf16 %v37
    %v172 = vunpack.c.h.bf16 %v37
    %v173 = vunpack.c.l.bf16 %v38
    %v174 = vunpack.c.h.bf16 %v38
    %v175 = vunpack.c.l.bf16 %v39
    %v176 = vunpack.c.h.bf16 %v39
    %v177 = vunpack.c.l.bf16 %v40
    %v178 = vunpack.c.h.bf16 %v40
    %v179 = vunpack.c.l.bf16 %v41
    %v180 = vunpack.c.h.bf16 %v41
    %v181 = vunpack.c.l.bf16 %v42
    %v182 = vunpack.c.h.bf16 %v42
    %v183 = vunpack.c.l.bf16 %v43
    %v184 = vunpack.c.h.bf16 %v43
    %v185 = vunpack.c.l.bf16 %v44
    %v186 = vunpack.c.h.bf16 %v44
    %v187 = vunpack.c.l.bf16 %v45
    %v188 = vunpack.c.h.bf16 %v45
    %v189 = vunpack.c.l.bf16 %v46
    %v190 = vunpack.c.h.bf16 %v46
    %v191 = vunpack.c.l.bf16 %v47
    %v192 = vunpack.c.h.bf16 %v47
    %v193 = vunpack.c.l.bf16 %v48
    %v194 = vunpack.c.h.bf16 %v48
    %v195 = vunpack.c.l.bf16 %v49
    %v196 = vunpack.c.h.bf16 %v49
    %v197 = vunpack.c.l.bf16 %v50
    %v198 = vunpack.c.h.bf16 %v50
    %v199 = vunpack.c.l.bf16 %v51
    %v200 = vunpack.c.h.bf16 %v51
    %v201 = vunpack.c.l.bf16 %v52
    %v202 = vunpack.c.h.bf16 %v52
    %v203 = vunpack.c.l.bf16 %v53
    %v204 = vunpack.c.h.bf16 %v53
    %v205 = vunpack.c.l.bf16 %v54
    %v206 = vunpack.c.h.bf16 %v54
    %v207 = vunpack.c.l.bf16 %v55
    %v208 = vunpack.c.h.bf16 %v55
    %v209 = vunpack.c.l.bf16 %v56
    %v210 = vunpack.c.h.bf16 %v56
    %v211 = vunpack.c.l.bf16 %v57
    %v212 = vunpack.c.h.bf16 %v57
    %v213 = vunpack.c.l.bf16 %v58
    %v214 = vunpack.c.h.bf16 %v58
    %v215 = vunpack.c.l.bf16 %v59
    %v216 = vunpack.c.h.bf16 %v59
    %v217 = vunpack.c.l.bf16 %v60
    %v218 = vunpack.c.h.bf16 %v60
    %v219 = vunpack.c.l.bf16 %v61
    %v220 = vunpack.c.h.bf16 %v61
    %v221 = vunpack.c.l.bf16 %v62
    %v222 = vunpack.c.h.bf16 %v62
    %v223 = vunpack.c.l.bf16 %v63
    %v224 = vunpack.c.h.bf16 %v63
    %v225 = vunpack.c.l.bf16 %v64
    %v226 = vunpack.c.h.bf16 %v64
    %v227 = vunpack.c.l.bf16 %v65
    %v228 = vunpack.c.h.bf16 %v65
    %v229 = vunpack.c.l.bf16 %v66
    %v230 = vunpack.c.h.bf16 %v66
    %v231 = vunpack.c.l.bf16 %v67
    %v232 = vunpack.c.h.bf16 %v67
    %v233 = vunpack.c.l.bf16 %v68
    %v234 = vunpack.c.h.bf16 %v68
    %v235 = vunpack.c.l.bf16 %v69
    %v236 = vunpack.c.h.bf16 %v69
    %v237 = vunpack.c.l.bf16 %v70
    %v238 = vunpack.c.h.bf16 %v70
    %v239 = vunpack.c.l.bf16 %v71
    %v240 = vunpack.c.h.bf16 %v71
    %v241 = vunpack.c.l.bf16 %v72
    %v242 = vunpack.c.h.bf16 %v72
    %v243 = vunpack.c.l.bf16 %v73
    %v244 = vunpack.c.h.bf16 %v73
    %v245 = vunpack.c.l.bf16 %v74
    %v246 = vunpack.c.h.bf16 %v74
    %v247 = vunpack.c.l.bf16 %v75
    %v248 = vunpack.c.h.bf16 %v75
    %v249 = vunpack.c.l.bf16 %v76
    %v250 = vunpack.c.h.bf16 %v76
    %v251 = vunpack.c.l.bf16 %v77
    %v252 = vunpack.c.h.bf16 %v77
    %v253 = vunpack.c.l.bf16 %v78
    %v254 = vunpack.c.h.bf16 %v78
    %v255 = vunpack.c.l.bf16 %v79
    %v256 = vunpack.c.h.bf16 %v79
    %v257 = vunpack.c.l.bf16 %v80
    %v258 = vunpack.c.h.bf16 %v80
    %v259 = vunpack.c.l.bf16 %v81
    %v260 = vunpack.c.h.bf16 %v81
    %v261 = vunpack.c.l.bf16 %v82
    %v262 = vunpack.c.h.bf16 %v82
    %v263 = vunpack.c.l.bf16 %v83
    %v264 = vunpack.c.h.bf16 %v83
    %v265 = vunpack.c.l.bf16 %v84
    %v266 = vunpack.c.h.bf16 %v84
    %v267 = vunpack.c.l.bf16 %v85
    %v268 = vunpack.c.h.bf16 %v85
    %v269 = vunpack.c.l.bf16 %v86
    %v270 = vunpack.c.h.bf16 %v86
    %v271 = vunpack.c.l.bf16 %v87
    %v272 = vunpack.c.h.bf16 %v87
    %v273 = vunpack.c.l.bf16 %v88
    %v274 = vunpack.c.h.bf16 %v88
    %v275 = vunpack.c.l.bf16 %v89
    %v276 = vunpack.c.h.bf16 %v89
    %v277 = vunpack.c.l.bf16 %v90
    %v278 = vunpack.c.h.bf16 %v90
    %v279 = vunpack.c.l.bf16 %v91
    %v280 = vunpack.c.h.bf16 %v91
    %v281 = vunpack.c.l.bf16 %v92
    %v282 = vunpack.c.h.bf16 %v92
    %v283 = vunpack.c.l.bf16 %v93
    %v284 = vunpack.c.h.bf16 %v93
    %v285 = vunpack.c.l.bf16 %v94
    %v286 = vunpack.c.h.bf16 %v94
    %v287 = vunpack.c.l.bf16 %v95
    %v288 = vunpack.c.h.bf16 %v95
    %v289 = vunpack.c.l.bf16 %v96
    %v290 = vunpack.c.h.bf16 %v96
    %v291 = vunpack.c.l.bf16 %v97
    %v292 = vunpack.c.h.bf16 %v97
    %v293 = vunpack.c.l.bf16 %v98
    %v294 = vunpack.c.h.bf16 %v98
    %v295 = vunpack.c.l.bf16 %v99
    %v296 = vunpack.c.h.bf16 %v99
    %v297 = vunpack.c.l.bf16 %v100
    %v298 = vunpack.c.h.bf16 %v100
    %v299 = vunpack.c.l.bf16 %v101
    %v300 = vunpack.c.h.bf16 %v101
    %v301 = vunpack.c.l.bf16 %v102
    %v302 = vunpack.c.h.bf16 %v102
    %v303 = vunpack.c.l.bf16 %v103
    %v304 = vunpack.c.h.bf16 %v103
    %v305 = vunpack.c.l.bf16 %v104
    %v306 = vunpack.c.h.bf16 %v104
    %v307 = vunpack.c.l.bf16 %v105
    %v308 = vunpack.c.h.bf16 %v105
    %v309 = vunpack.c.l.bf16 %v106
    %v310 = vunpack.c.h.bf16 %v106
    %v311 = vunpack.c.l.bf16 %v107
    %v312 = vunpack.c.h.bf16 %v107
    %v313 = vunpack.c.l.bf16 %v108
    %v314 = vunpack.c.h.bf16 %v108
    %v315 = vunpack.c.l.bf16 %v109
    %v316 = vunpack.c.h.bf16 %v109
    %v317 = vunpack.c.l.bf16 %v110
    %v318 = vunpack.c.h.bf16 %v110
    %v319 = vunpack.c.l.bf16 %v111
    %v320 = vunpack.c.h.bf16 %v111
    %v321 = vunpack.c.l.bf16 %v112
    %v322 = vunpack.c.h.bf16 %v112
    %v323 = vunpack.c.l.bf16 %v113
    %v324 = vunpack.c.h.bf16 %v113
    %v325 = vunpack.c.l.bf16 %v114
    %v326 = vunpack.c.h.bf16 %v114
    %v327 = vunpack.c.l.bf16 %v115
    %v328 = vunpack.c.h.bf16 %v115
    %v329 = vunpack.c.l.bf16 %v116
    %v330 = vunpack.c.h.bf16 %v116
    %v331 = vunpack.c.l.bf16 %v117
    %v332 = vunpack.c.h.bf16 %v117
    %v333 = vunpack.c.l.bf16 %v118
    %v334 = vunpack.c.h.bf16 %v118
    %v335 = vunpack.c.l.bf16 %v119
    %v336 = vunpack.c.h.bf16 %v119
    %v337 = vunpack.c.l.bf16 %v120
    %v338 = vunpack.c.h.bf16 %v120
    %v339 = vunpack.c.l.bf16 %v121
    %v340 = vunpack.c.h.bf16 %v121
    %v341 = vunpack.c.l.bf16 %v122
    %v342 = vunpack.c.h.bf16 %v122
    %v343 = vunpack.c.l.bf16 %v123
    %v344 = vunpack.c.h.bf16 %v123
    %v345 = vunpack.c.l.bf16 %v124
    %v346 = vunpack.c.h.bf16 %v124
    %v347 = vunpack.c.l.bf16 %v125
    %v348 = vunpack.c.h.bf16 %v125
    %v349 = vunpack.c.l.bf16 %v126
    %v350 = vunpack.c.h.bf16 %v126
    %v351 = vadd.f32 %v127, %v143
    %v352 = vadd.f32 %v351, %v159
    %v353 = vadd.f32 %v352, %v175
    %v354 = vadd.f32 %v353, %v191
    %v355 = vadd.f32 %v354, %v207
    %vm356 = vcmask 1040384
    %v357 = vsel %vm356, %v223, 0.0
    %v358 = vadd.f32 %v355, %v357
    %v359 = vrot.slane %v358, 4
    %v360 = vadd.f32 %v358, %v359
    %v361 = vrot.slane %v360, 2
    %v362 = vadd.f32 %v360, %v361
    %v363 = vrot.slane %v362, 1
    %v364 = vadd.f32 %v362, %v363
    %v365 = vadd.f32 %v128, %v144
    %v366 = vadd.f32 %v365, %v160
    %v367 = vadd.f32 %v366, %v176
    %v368 = vadd.f32 %v367, %v192
    %v369 = vadd.f32 %v368, %v208
    %v370 = vsel %vm356, %v224, 0.0
    %v371 = vadd.f32 %v369, %v370
    %v372 = vrot.slane %v371, 4
    %v373 = vadd.f32 %v371, %v372
    %v374 = vrot.slane %v373, 2
    %v375 = vadd.f32 %v373, %v374
    %v376 = vrot.slane %v375, 1
    %v377 = vadd.f32 %v375, %v376
    %v378 = vadd.f32 %v129, %v145
    %v379 = vadd.f32 %v378, %v161
    %v380 = vadd.f32 %v379, %v177
    %v381 = vadd.f32 %v380, %v193
    %v382 = vadd.f32 %v381, %v209
    %v383 = vsel %vm356, %v225, 0.0
    %v384 = vadd.f32 %v382, %v383
    %v385 = vrot.slane %v384, 4
    %v386 = vadd.f32 %v384, %v385
    %v387 = vrot.slane %v386, 2
    %v388 = vadd.f32 %v386, %v387
    %v389 = vrot.slane %v388, 1
    %v390 = vadd.f32 %v388, %v389
    %v391 = vadd.f32 %v130, %v146
    %v392 = vadd.f32 %v391, %v162
    %v393 = vadd.f32 %v392, %v178
    %v394 = vadd.f32 %v393, %v194
    %v395 = vadd.f32 %v394, %v210
    %v396 = vsel %vm356, %v226, 0.0
    %v397 = vadd.f32 %v395, %v396
    %v398 = vrot.slane %v397, 4
    %v399 = vadd.f32 %v397, %v398
    %v400 = vrot.slane %v399, 2
    %v401 = vadd.f32 %v399, %v400
    %v402 = vrot.slane %v401, 1
    %v403 = vadd.f32 %v401, %v402
    %v404 = vadd.f32 %v131, %v147
    %v405 = vadd.f32 %v404, %v163
    %v406 = vadd.f32 %v405, %v179
    %v407 = vadd.f32 %v406, %v195
    %v408 = vadd.f32 %v407, %v211
    %v409 = vsel %vm356, %v227, 0.0
    %v410 = vadd.f32 %v408, %v409
    %v411 = vrot.slane %v410, 4
    %v412 = vadd.f32 %v410, %v411
    %v413 = vrot.slane %v412, 2
    %v414 = vadd.f32 %v412, %v413
    %v415 = vrot.slane %v414, 1
    %v416 = vadd.f32 %v414, %v415
    %v417 = vadd.f32 %v132, %v148
    %v418 = vadd.f32 %v417, %v164
    %v419 = vadd.f32 %v418, %v180
    %v420 = vadd.f32 %v419, %v196
    %v421 = vadd.f32 %v420, %v212
    %v422 = vsel %vm356, %v228, 0.0
    %v423 = vadd.f32 %v421, %v422
    %v424 = vrot.slane %v423, 4
    %v425 = vadd.f32 %v423, %v424
    %v426 = vrot.slane %v425, 2
    %v427 = vadd.f32 %v425, %v426
    %v428 = vrot.slane %v427, 1
    %v429 = vadd.f32 %v427, %v428
    %v430 = vadd.f32 %v133, %v149
    %v431 = vadd.f32 %v430, %v165
    %v432 = vadd.f32 %v431, %v181
    %v433 = vadd.f32 %v432, %v197
    %v434 = vadd.f32 %v433, %v213
    %v435 = vsel %vm356, %v229, 0.0
    %v436 = vadd.f32 %v434, %v435
    %v437 = vrot.slane %v436, 4
    %v438 = vadd.f32 %v436, %v437
    %v439 = vrot.slane %v438, 2
    %v440 = vadd.f32 %v438, %v439
    %v441 = vrot.slane %v440, 1
    %v442 = vadd.f32 %v440, %v441
    %v443 = vadd.f32 %v134, %v150
    %v444 = vadd.f32 %v443, %v166
    %v445 = vadd.f32 %v444, %v182
    %v446 = vadd.f32 %v445, %v198
    %v447 = vadd.f32 %v446, %v214
    %v448 = vsel %vm356, %v230, 0.0
    %v449 = vadd.f32 %v447, %v448
    %v450 = vrot.slane %v449, 4
    %v451 = vadd.f32 %v449, %v450
    %v452 = vrot.slane %v451, 2
    %v453 = vadd.f32 %v451, %v452
    %v454 = vrot.slane %v453, 1
    %v455 = vadd.f32 %v453, %v454
    %v456 = vadd.f32 %v135, %v151
    %v457 = vadd.f32 %v456, %v167
    %v458 = vadd.f32 %v457, %v183
    %v459 = vadd.f32 %v458, %v199
    %v460 = vadd.f32 %v459, %v215
    %v461 = vsel %vm356, %v231, 0.0
    %v462 = vadd.f32 %v460, %v461
    %v463 = vrot.slane %v462, 4
    %v464 = vadd.f32 %v462, %v463
    %v465 = vrot.slane %v464, 2
    %v466 = vadd.f32 %v464, %v465
    %v467 = vrot.slane %v466, 1
    %v468 = vadd.f32 %v466, %v467
    %v469 = vadd.f32 %v136, %v152
    %v470 = vadd.f32 %v469, %v168
    %v471 = vadd.f32 %v470, %v184
    %v472 = vadd.f32 %v471, %v200
    %v473 = vadd.f32 %v472, %v216
    %v474 = vsel %vm356, %v232, 0.0
    %v475 = vadd.f32 %v473, %v474
    %v476 = vrot.slane %v475, 4
    %v477 = vadd.f32 %v475, %v476
    %v478 = vrot.slane %v477, 2
    %v479 = vadd.f32 %v477, %v478
    %v480 = vrot.slane %v479, 1
    %v481 = vadd.f32 %v479, %v480
    %v482 = vadd.f32 %v137, %v153
    %v483 = vadd.f32 %v482, %v169
    %v484 = vadd.f32 %v483, %v185
    %v485 = vadd.f32 %v484, %v201
    %v486 = vadd.f32 %v485, %v217
    %v487 = vsel %vm356, %v233, 0.0
    %v488 = vadd.f32 %v486, %v487
    %v489 = vrot.slane %v488, 4
    %v490 = vadd.f32 %v488, %v489
    %v491 = vrot.slane %v490, 2
    %v492 = vadd.f32 %v490, %v491
    %v493 = vrot.slane %v492, 1
    %v494 = vadd.f32 %v492, %v493
    %v495 = vadd.f32 %v138, %v154
    %v496 = vadd.f32 %v495, %v170
    %v497 = vadd.f32 %v496, %v186
    %v498 = vadd.f32 %v497, %v202
    %v499 = vadd.f32 %v498, %v218
    %v500 = vsel %vm356, %v234, 0.0
    %v501 = vadd.f32 %v499, %v500
    %v502 = vrot.slane %v501, 4
    %v503 = vadd.f32 %v501, %v502
    %v504 = vrot.slane %v503, 2
    %v505 = vadd.f32 %v503, %v504
    %v506 = vrot.slane %v505, 1
    %v507 = vadd.f32 %v505, %v506
    %v508 = vadd.f32 %v139, %v155
    %v509 = vadd.f32 %v508, %v171
    %v510 = vadd.f32 %v509, %v187
    %v511 = vadd.f32 %v510, %v203
    %v512 = vadd.f32 %v511, %v219
    %v513 = vsel %vm356, %v235, 0.0
    %v514 = vadd.f32 %v512, %v513
    %v515 = vrot.slane %v514, 4
    %v516 = vadd.f32 %v514, %v515
    %v517 = vrot.slane %v516, 2
    %v518 = vadd.f32 %v516, %v517
    %v519 = vrot.slane %v518, 1
    %v520 = vadd.f32 %v518, %v519
    %v521 = vadd.f32 %v140, %v156
    %v522 = vadd.f32 %v521, %v172
    %v523 = vadd.f32 %v522, %v188
    %v524 = vadd.f32 %v523, %v204
    %v525 = vadd.f32 %v524, %v220
    %v526 = vsel %vm356, %v236, 0.0
    %v527 = vadd.f32 %v525, %v526
    %v528 = vrot.slane %v527, 4
    %v529 = vadd.f32 %v527, %v528
    %v530 = vrot.slane %v529, 2
    %v531 = vadd.f32 %v529, %v530
    %v532 = vrot.slane %v531, 1
    %v533 = vadd.f32 %v531, %v532
    %v534 = vadd.f32 %v141, %v157
    %v535 = vadd.f32 %v534, %v173
    %v536 = vadd.f32 %v535, %v189
    %v537 = vadd.f32 %v536, %v205
    %v538 = vadd.f32 %v537, %v221
    %v539 = vsel %vm356, %v237, 0.0
    %v540 = vadd.f32 %v538, %v539
    %v541 = vrot.slane %v540, 4
    %v542 = vadd.f32 %v540, %v541
    %v543 = vrot.slane %v542, 2
    %v544 = vadd.f32 %v542, %v543
    %v545 = vrot.slane %v544, 1
    %v546 = vadd.f32 %v544, %v545
    %v547 = vadd.f32 %v142, %v158
    %v548 = vadd.f32 %v547, %v174
    %v549 = vadd.f32 %v548, %v190
    %v550 = vadd.f32 %v549, %v206
    %v551 = vadd.f32 %v550, %v222
    %v552 = vsel %vm356, %v238, 0.0
    %v553 = vadd.f32 %v551, %v552
    %v554 = vrot.slane %v553, 4
    %v555 = vadd.f32 %v553, %v554
    %v556 = vrot.slane %v555, 2
    %v557 = vadd.f32 %v555, %v556
    %v558 = vrot.slane %v557, 1
    %v559 = vadd.f32 %v557, %v558
    %v560 = vadd.f32 %v239, %v255
    %v561 = vadd.f32 %v560, %v271
    %v562 = vadd.f32 %v561, %v287
    %v563 = vadd.f32 %v562, %v303
    %v564 = vadd.f32 %v563, %v319
    %v565 = vsel %vm356, %v335, 0.0
    %v566 = vadd.f32 %v564, %v565
    %v567 = vrot.slane %v566, 4
    %v568 = vadd.f32 %v566, %v567
    %v569 = vrot.slane %v568, 2
    %v570 = vadd.f32 %v568, %v569
    %v571 = vrot.slane %v570, 1
    %v572 = vadd.f32 %v570, %v571
    %v573 = vadd.f32 %v240, %v256
    %v574 = vadd.f32 %v573, %v272
    %v575 = vadd.f32 %v574, %v288
    %v576 = vadd.f32 %v575, %v304
    %v577 = vadd.f32 %v576, %v320
    %v578 = vsel %vm356, %v336, 0.0
    %v579 = vadd.f32 %v577, %v578
    %v580 = vrot.slane %v579, 4
    %v581 = vadd.f32 %v579, %v580
    %v582 = vrot.slane %v581, 2
    %v583 = vadd.f32 %v581, %v582
    %v584 = vrot.slane %v583, 1
    %v585 = vadd.f32 %v583, %v584
    %v586 = vadd.f32 %v241, %v257
    %v587 = vadd.f32 %v586, %v273
    %v588 = vadd.f32 %v587, %v289
    %v589 = vadd.f32 %v588, %v305
    %v590 = vadd.f32 %v589, %v321
    %v591 = vsel %vm356, %v337, 0.0
    %v592 = vadd.f32 %v590, %v591
    %v593 = vrot.slane %v592, 4
    %v594 = vadd.f32 %v592, %v593
    %v595 = vrot.slane %v594, 2
    %v596 = vadd.f32 %v594, %v595
    %v597 = vrot.slane %v596, 1
    %v598 = vadd.f32 %v596, %v597
    %v599 = vadd.f32 %v242, %v258
    %v600 = vadd.f32 %v599, %v274
    %v601 = vadd.f32 %v600, %v290
    %v602 = vadd.f32 %v601, %v306
    %v603 = vadd.f32 %v602, %v322
    %v604 = vsel %vm356, %v338, 0.0
    %v605 = vadd.f32 %v603, %v604
    %v606 = vrot.slane %v605, 4
    %v607 = vadd.f32 %v605, %v606
    %v608 = vrot.slane %v607, 2
    %v609 = vadd.f32 %v607, %v608
    %v610 = vrot.slane %v609, 1
    %v611 = vadd.f32 %v609, %v610
    %v612 = vadd.f32 %v243, %v259
    %v613 = vadd.f32 %v612, %v275
    %v614 = vadd.f32 %v613, %v291
    %v615 = vadd.f32 %v614, %v307
    %v616 = vadd.f32 %v615, %v323
    %v617 = vsel %vm356, %v339, 0.0
    %v618 = vadd.f32 %v616, %v617
    %v619 = vrot.slane %v618, 4
    %v620 = vadd.f32 %v618, %v619
    %v621 = vrot.slane %v620, 2
    %v622 = vadd.f32 %v620, %v621
    %v623 = vrot.slane %v622, 1
    %v624 = vadd.f32 %v622, %v623
    %v625 = vadd.f32 %v244, %v260
    %v626 = vadd.f32 %v625, %v276
    %v627 = vadd.f32 %v626, %v292
    %v628 = vadd.f32 %v627, %v308
    %v629 = vadd.f32 %v628, %v324
    %v630 = vsel %vm356, %v340, 0.0
    %v631 = vadd.f32 %v629, %v630
    %v632 = vrot.slane %v631, 4
    %v633 = vadd.f32 %v631, %v632
    %v634 = vrot.slane %v633, 2
    %v635 = vadd.f32 %v633, %v634
    %v636 = vrot.slane %v635, 1
    %v637 = vadd.f32 %v635, %v636
    %v638 = vadd.f32 %v245, %v261
    %v639 = vadd.f32 %v638, %v277
    %v640 = vadd.f32 %v639, %v293
    %v641 = vadd.f32 %v640, %v309
    %v642 = vadd.f32 %v641, %v325
    %v643 = vsel %vm356, %v341, 0.0
    %v644 = vadd.f32 %v642, %v643
    %v645 = vrot.slane %v644, 4
    %v646 = vadd.f32 %v644, %v645
    %v647 = vrot.slane %v646, 2
    %v648 = vadd.f32 %v646, %v647
    %v649 = vrot.slane %v648, 1
    %v650 = vadd.f32 %v648, %v649
    %v651 = vadd.f32 %v246, %v262
    %v652 = vadd.f32 %v651, %v278
    %v653 = vadd.f32 %v652, %v294
    %v654 = vadd.f32 %v653, %v310
    %v655 = vadd.f32 %v654, %v326
    %v656 = vsel %vm356, %v342, 0.0
    %v657 = vadd.f32 %v655, %v656
    %v658 = vrot.slane %v657, 4
    %v659 = vadd.f32 %v657, %v658
    %v660 = vrot.slane %v659, 2
    %v661 = vadd.f32 %v659, %v660
    %v662 = vrot.slane %v661, 1
    %v663 = vadd.f32 %v661, %v662
    %v664 = vadd.f32 %v247, %v263
    %v665 = vadd.f32 %v664, %v279
    %v666 = vadd.f32 %v665, %v295
    %v667 = vadd.f32 %v666, %v311
    %v668 = vadd.f32 %v667, %v327
    %v669 = vsel %vm356, %v343, 0.0
    %v670 = vadd.f32 %v668, %v669
    %v671 = vrot.slane %v670, 4
    %v672 = vadd.f32 %v670, %v671
    %v673 = vrot.slane %v672, 2
    %v674 = vadd.f32 %v672, %v673
    %v675 = vrot.slane %v674, 1
    %v676 = vadd.f32 %v674, %v675
    %v677 = vadd.f32 %v248, %v264
    %v678 = vadd.f32 %v677, %v280
    %v679 = vadd.f32 %v678, %v296
    %v680 = vadd.f32 %v679, %v312
    %v681 = vadd.f32 %v680, %v328
    %v682 = vsel %vm356, %v344, 0.0
    %v683 = vadd.f32 %v681, %v682
    %v684 = vrot.slane %v683, 4
    %v685 = vadd.f32 %v683, %v684
    %v686 = vrot.slane %v685, 2
    %v687 = vadd.f32 %v685, %v686
    %v688 = vrot.slane %v687, 1
    %v689 = vadd.f32 %v687, %v688
    %v690 = vadd.f32 %v249, %v265
    %v691 = vadd.f32 %v690, %v281
    %v692 = vadd.f32 %v691, %v297
    %v693 = vadd.f32 %v692, %v313
    %v694 = vadd.f32 %v693, %v329
    %v695 = vsel %vm356, %v345, 0.0
    %v696 = vadd.f32 %v694, %v695
    %v697 = vrot.slane %v696, 4
    %v698 = vadd.f32 %v696, %v697
    %v699 = vrot.slane %v698, 2
    %v700 = vadd.f32 %v698, %v699
    %v701 = vrot.slane %v700, 1
    %v702 = vadd.f32 %v700, %v701
    %v703 = vadd.f32 %v250, %v266
    %v704 = vadd.f32 %v703, %v282
    %v705 = vadd.f32 %v704, %v298
    %v706 = vadd.f32 %v705, %v314
    %v707 = vadd.f32 %v706, %v330
    %v708 = vsel %vm356, %v346, 0.0
    %v709 = vadd.f32 %v707, %v708
    %v710 = vrot.slane %v709, 4
    %v711 = vadd.f32 %v709, %v710
    %v712 = vrot.slane %v711, 2
    %v713 = vadd.f32 %v711, %v712
    %v714 = vrot.slane %v713, 1
    %v715 = vadd.f32 %v713, %v714
    %v716 = vadd.f32 %v251, %v267
    %v717 = vadd.f32 %v716, %v283
    %v718 = vadd.f32 %v717, %v299
    %v719 = vadd.f32 %v718, %v315
    %v720 = vadd.f32 %v719, %v331
    %v721 = vsel %vm356, %v347, 0.0
    %v722 = vadd.f32 %v720, %v721
    %v723 = vrot.slane %v722, 4
    %v724 = vadd.f32 %v722, %v723
    %v725 = vrot.slane %v724, 2
    %v726 = vadd.f32 %v724, %v725
    %v727 = vrot.slane %v726, 1
    %v728 = vadd.f32 %v726, %v727
    %v729 = vadd.f32 %v252, %v268
    %v730 = vadd.f32 %v729, %v284
    %v731 = vadd.f32 %v730, %v300
    %v732 = vadd.f32 %v731, %v316
    %v733 = vadd.f32 %v732, %v332
    %v734 = vsel %vm356, %v348, 0.0
    %v735 = vadd.f32 %v733, %v734
    %v736 = vrot.slane %v735, 4
    %v737 = vadd.f32 %v735, %v736
    %v738 = vrot.slane %v737, 2
    %v739 = vadd.f32 %v737, %v738
    %v740 = vrot.slane %v739, 1
    %v741 = vadd.f32 %v739, %v740
    %v742 = vadd.f32 %v253, %v269
    %v743 = vadd.f32 %v742, %v285
    %v744 = vadd.f32 %v743, %v301
    %v745 = vadd.f32 %v744, %v317
    %v746 = vadd.f32 %v745, %v333
    %v747 = vsel %vm356, %v349, 0.0
    %v748 = vadd.f32 %v746, %v747
    %v749 = vrot.slane %v748, 4
    %v750 = vadd.f32 %v748, %v749
    %v751 = vrot.slane %v750, 2
    %v752 = vadd.f32 %v750, %v751
    %v753 = vrot.slane %v752, 1
    %v754 = vadd.f32 %v752, %v753
    %v755 = vadd.f32 %v254, %v270
    %v756 = vadd.f32 %v755, %v286
    %v757 = vadd.f32 %v756, %v302
    %v758 = vadd.f32 %v757, %v318
    %v759 = vadd.f32 %v758, %v334
    %v760 = vsel %vm356, %v350, 0.0
    %v761 = vadd.f32 %v759, %v760
    %v762 = vrot.slane %v761, 4
    %v763 = vadd.f32 %v761, %v762
    %v764 = vrot.slane %v763, 2
    %v765 = vadd.f32 %v763, %v764
    %v766 = vrot.slane %v765, 1
    %v767 = vadd.f32 %v765, %v766
    %v768 = vld [vmem:[%s1] sm:$0xff]
    %v769 = vld [vmem:[%s1 + $0x8] sm:$0xff]
    %v770 = vld [vmem:[%s1 + $0x10] sm:$0xff]
    %v771 = vld [vmem:[%s1 + $0x18] sm:$0xff]
    %v772 = vld [vmem:[%s1 + $0x20] sm:$0xff]
    %v773 = vld [vmem:[%s1 + $0x28] sm:$0xff]
    %v774 = vld [vmem:[%s1 + $0x30] sm:$0xff]
    %v775 = vld [vmem:[%s1 + $0x38] sm:$0xff]
    %v776 = vld [vmem:[%s1 + $0x40] sm:$0xff]
    %v777 = vld [vmem:[%s1 + $0x48] sm:$0xff]
    %v778 = vld [vmem:[%s1 + $0x50] sm:$0xff]
    %v779 = vld [vmem:[%s1 + $0x58] sm:$0xff]
    %v780 = vld [vmem:[%s1 + $0x60] sm:$0xff]
    %v781 = vld [vmem:[%s1 + $0x68] sm:$0xff]
    %v782 = vld [vmem:[%s1 + $0x70] sm:$0xff]
    %v783 = vld [vmem:[%s1 + $0x78] sm:$0xff]
    %v784 = vld [vmem:[%s1 + $0x80] sm:$0xff]
    %v785 = vld [vmem:[%s1 + $0x88] sm:$0xff]
    %v786 = vld [vmem:[%s1 + $0x90] sm:$0xff]
    %v787 = vld [vmem:[%s1 + $0x98] sm:$0xff]
    %v788 = vld [vmem:[%s1 + $0xa0] sm:$0xff]
    %v789 = vld [vmem:[%s1 + $0xa8] sm:$0xff]
    %v790 = vld [vmem:[%s1 + $0xb0] sm:$0xff]
    %v791 = vld [vmem:[%s1 + $0xb8] sm:$0xff]
    %v792 = vld [vmem:[%s1 + $0xc0] sm:$0xff]
    %v793 = vld [vmem:[%s1 + $0xc8] sm:$0xff]
    %v794 = vld [vmem:[%s1 + $0xd0] sm:$0xff]
    %v795 = vld [vmem:[%s1 + $0xd8] sm:$0xff]
    %v796 = vld [vmem:[%s1 + $0xe0] sm:$0xff]
    %v797 = vld [vmem:[%s1 + $0xe8] sm:$0xff]
    %v798 = vld [vmem:[%s1 + $0xf0] sm:$0xff]
    %v799 = vld [vmem:[%s1 + $0xf8] sm:$0xff]
    %v800 = vld [vmem:[%s1 + $0x100] sm:$0xff]
    %v801 = vld [vmem:[%s1 + $0x108] sm:$0xff]
    %v802 = vld [vmem:[%s1 + $0x110] sm:$0xff]
    %v803 = vld [vmem:[%s1 + $0x118] sm:$0xff]
    %v804 = vld [vmem:[%s1 + $0x120] sm:$0xff]
    %v805 = vld [vmem:[%s1 + $0x128] sm:$0xff]
    %v806 = vld [vmem:[%s1 + $0x130] sm:$0xff]
    %v807 = vld [vmem:[%s1 + $0x138] sm:$0xff]
    %v808 = vld [vmem:[%s1 + $0x140] sm:$0xff]
    %v809 = vld [vmem:[%s1 + $0x148] sm:$0xff]
    %v810 = vld [vmem:[%s1 + $0x150] sm:$0xff]
    %v811 = vld [vmem:[%s1 + $0x158] sm:$0xff]
    %v812 = vld [vmem:[%s1 + $0x160] sm:$0xff]
    %v813 = vld [vmem:[%s1 + $0x168] sm:$0xff]
    %v814 = vld [vmem:[%s1 + $0x170] sm:$0xff]
    %v815 = vld [vmem:[%s1 + $0x178] sm:$0xff]
    %v816 = vld [vmem:[%s1 + $0x180] sm:$0xff]
    %v817 = vld [vmem:[%s1 + $0x188] sm:$0xff]
    %v818 = vld [vmem:[%s1 + $0x190] sm:$0xff]
    %v819 = vld [vmem:[%s1 + $0x198] sm:$0xff]
    %v820 = vld [vmem:[%s1 + $0x1a0] sm:$0xff]
    %v821 = vld [vmem:[%s1 + $0x1a8] sm:$0xff]
    %v822 = vld [vmem:[%s1 + $0x1b0] sm:$0xff]
    %v823 = vld [vmem:[%s1 + $0x1b8] sm:$0xff]
    %v824 = vld [vmem:[%s1 + $0x1c0] sm:$0xff]
    %v825 = vld [vmem:[%s1 + $0x1c8] sm:$0xff]
    %v826 = vld [vmem:[%s1 + $0x1d0] sm:$0xff]
    %v827 = vld [vmem:[%s1 + $0x1d8] sm:$0xff]
    %v828 = vld [vmem:[%s1 + $0x1e0] sm:$0xff]
    %v829 = vld [vmem:[%s1 + $0x1e8] sm:$0xff]
    %v830 = vld [vmem:[%s1 + $0x1f0] sm:$0xff]
    %v831 = vld [vmem:[%s1 + $0x1f8] sm:$0xff]
    %v832 = vld [vmem:[%s1 + $0x200] sm:$0xff]
    %v833 = vld [vmem:[%s1 + $0x208] sm:$0xff]
    %v834 = vld [vmem:[%s1 + $0x210] sm:$0xff]
    %v835 = vld [vmem:[%s1 + $0x218] sm:$0xff]
    %v836 = vld [vmem:[%s1 + $0x220] sm:$0xff]
    %v837 = vld [vmem:[%s1 + $0x228] sm:$0xff]
    %v838 = vld [vmem:[%s1 + $0x230] sm:$0xff]
    %v839 = vld [vmem:[%s1 + $0x238] sm:$0xff]
    %v840 = vld [vmem:[%s1 + $0x240] sm:$0xff]
    %v841 = vld [vmem:[%s1 + $0x248] sm:$0xff]
    %v842 = vld [vmem:[%s1 + $0x250] sm:$0xff]
    %v843 = vld [vmem:[%s1 + $0x258] sm:$0xff]
    %v844 = vld [vmem:[%s1 + $0x260] sm:$0xff]
    %v845 = vld [vmem:[%s1 + $0x268] sm:$0xff]
    %v846 = vld [vmem:[%s1 + $0x270] sm:$0xff]
    %v847 = vld [vmem:[%s1 + $0x278] sm:$0xff]
    %v848 = vld [vmem:[%s1 + $0x280] sm:$0xff]
    %v849 = vld [vmem:[%s1 + $0x288] sm:$0xff]
    %v850 = vld [vmem:[%s1 + $0x290] sm:$0xff]
    %v851 = vld [vmem:[%s1 + $0x298] sm:$0xff]
    %v852 = vld [vmem:[%s1 + $0x2a0] sm:$0xff]
    %v853 = vld [vmem:[%s1 + $0x2a8] sm:$0xff]
    %v854 = vld [vmem:[%s1 + $0x2b0] sm:$0xff]
    %v855 = vld [vmem:[%s1 + $0x2b8] sm:$0xff]
    %v856 = vld [vmem:[%s1 + $0x2c0] sm:$0xff]
    %v857 = vld [vmem:[%s1 + $0x2c8] sm:$0xff]
    %v858 = vld [vmem:[%s1 + $0x2d0] sm:$0xff]
    %v859 = vld [vmem:[%s1 + $0x2d8] sm:$0xff]
    %v860 = vld [vmem:[%s1 + $0x2e0] sm:$0xff]
    %v861 = vld [vmem:[%s1 + $0x2e8] sm:$0xff]
    %v862 = vld [vmem:[%s1 + $0x2f0] sm:$0xff]
    %v863 = vld [vmem:[%s1 + $0x2f8] sm:$0xff]
    %v864 = vld [vmem:[%s1 + $0x300] sm:$0xff]
    %v865 = vld [vmem:[%s1 + $0x308] sm:$0xff]
    %v866 = vld [vmem:[%s1 + $0x310] sm:$0xff]
    %v867 = vld [vmem:[%s1 + $0x318] sm:$0xff]
    %v868 = vld [vmem:[%s1 + $0x320] sm:$0xff]
    %v869 = vld [vmem:[%s1 + $0x328] sm:$0xff]
    %v870 = vld [vmem:[%s1 + $0x330] sm:$0xff]
    %v871 = vld [vmem:[%s1 + $0x338] sm:$0xff]
    %v872 = vld [vmem:[%s1 + $0x340] sm:$0xff]
    %v873 = vld [vmem:[%s1 + $0x348] sm:$0xff]
    %v874 = vld [vmem:[%s1 + $0x350] sm:$0xff]
    %v875 = vld [vmem:[%s1 + $0x358] sm:$0xff]
    %v876 = vld [vmem:[%s1 + $0x360] sm:$0xff]
    %v877 = vld [vmem:[%s1 + $0x368] sm:$0xff]
    %v878 = vld [vmem:[%s1 + $0x370] sm:$0xff]
    %v879 = vld [vmem:[%s1 + $0x378] sm:$0xff]
    %v880 = vld [vmem:[%s1 + $0x380] sm:$0xff]
    %v881 = vld [vmem:[%s1 + $0x388] sm:$0xff]
    %v882 = vld [vmem:[%s1 + $0x390] sm:$0xff]
    %v883 = vld [vmem:[%s1 + $0x398] sm:$0xff]
    %v884 = vld [vmem:[%s1 + $0x3a0] sm:$0xff]
    %v885 = vld [vmem:[%s1 + $0x3a8] sm:$0xff]
    %v886 = vld [vmem:[%s1 + $0x3b0] sm:$0xff]
    %v887 = vld [vmem:[%s1 + $0x3b8] sm:$0xff]
    %v888 = vld [vmem:[%s1 + $0x3c0] sm:$0xff]
    %v889 = vld [vmem:[%s1 + $0x3c8] sm:$0xff]
    %v890 = vld [vmem:[%s1 + $0x3d0] sm:$0xff]
    %v891 = vld [vmem:[%s1 + $0x3d8] sm:$0xff]
    %v892 = vld [vmem:[%s1 + $0x3e0] sm:$0xff]
    %v893 = vld [vmem:[%s1 + $0x3e8] sm:$0xff]
    %v894 = vld [vmem:[%s1 + $0x3f0] sm:$0xff]
    %v895 = vld [vmem:[%s1 + $0x3f8] sm:$0xff]
    %v896 = vld [vmem:[%s1 + $0x400] sm:$0xff]
    %v897 = vld [vmem:[%s1 + $0x408] sm:$0xff]
    %v898 = vld [vmem:[%s1 + $0x410] sm:$0xff]
    %v899 = vld [vmem:[%s1 + $0x418] sm:$0xff]
    %v900 = vld [vmem:[%s1 + $0x420] sm:$0xff]
    %v901 = vld [vmem:[%s1 + $0x428] sm:$0xff]
    %v902 = vld [vmem:[%s1 + $0x430] sm:$0xff]
    %v903 = vld [vmem:[%s1 + $0x438] sm:$0xff]
    %v904 = vld [vmem:[%s1 + $0x440] sm:$0xff]
    %v905 = vld [vmem:[%s1 + $0x448] sm:$0xff]
    %v906 = vld [vmem:[%s1 + $0x450] sm:$0xff]
    %v907 = vld [vmem:[%s1 + $0x458] sm:$0xff]
    %v908 = vld [vmem:[%s1 + $0x460] sm:$0xff]
    %v909 = vld [vmem:[%s1 + $0x468] sm:$0xff]
    %v910 = vld [vmem:[%s1 + $0x470] sm:$0xff]
    %v911 = vld [vmem:[%s1 + $0x478] sm:$0xff]
    %v912 = vld [vmem:[%s1 + $0x480] sm:$0xff]
    %v913 = vld [vmem:[%s1 + $0x488] sm:$0xff]
    %v914 = vld [vmem:[%s1 + $0x490] sm:$0xff]
    %v915 = vld [vmem:[%s1 + $0x498] sm:$0xff]
    %v916 = vld [vmem:[%s1 + $0x4a0] sm:$0xff]
    %v917 = vld [vmem:[%s1 + $0x4a8] sm:$0xff]
    %v918 = vld [vmem:[%s1 + $0x4b0] sm:$0xff]
    %v919 = vld [vmem:[%s1 + $0x4b8] sm:$0xff]
    %v920 = vld [vmem:[%s1 + $0x4c0] sm:$0xff]
    %v921 = vld [vmem:[%s1 + $0x4c8] sm:$0xff]
    %v922 = vld [vmem:[%s1 + $0x4d0] sm:$0xff]
    %v923 = vld [vmem:[%s1 + $0x4d8] sm:$0xff]
    %v924 = vld [vmem:[%s1 + $0x4e0] sm:$0xff]
    %v925 = vld [vmem:[%s1 + $0x4e8] sm:$0xff]
    %v926 = vld [vmem:[%s1 + $0x4f0] sm:$0xff]
    %v927 = vld [vmem:[%s1 + $0x4f8] sm:$0xff]
    %v928 = vld [vmem:[%s1 + $0x500] sm:$0xff]
    %v929 = vld [vmem:[%s1 + $0x508] sm:$0xff]
    %v930 = vld [vmem:[%s1 + $0x510] sm:$0xff]
    %v931 = vld [vmem:[%s1 + $0x518] sm:$0xff]
    %v932 = vld [vmem:[%s1 + $0x520] sm:$0xff]
    %v933 = vld [vmem:[%s1 + $0x528] sm:$0xff]
    %v934 = vld [vmem:[%s1 + $0x530] sm:$0xff]
    %v935 = vld [vmem:[%s1 + $0x538] sm:$0xff]
    %v936 = vld [vmem:[%s1 + $0x540] sm:$0xff]
    %v937 = vld [vmem:[%s1 + $0x548] sm:$0xff]
    %v938 = vld [vmem:[%s1 + $0x550] sm:$0xff]
    %v939 = vld [vmem:[%s1 + $0x558] sm:$0xff]
    %v940 = vld [vmem:[%s1 + $0x560] sm:$0xff]
    %v941 = vld [vmem:[%s1 + $0x568] sm:$0xff]
    %v942 = vld [vmem:[%s1 + $0x570] sm:$0xff]
    %v943 = vld [vmem:[%s1 + $0x578] sm:$0xff]
    %v944 = vld [vmem:[%s1 + $0x580] sm:$0xff]
    %v945 = vld [vmem:[%s1 + $0x588] sm:$0xff]
    %v946 = vld [vmem:[%s1 + $0x590] sm:$0xff]
    %v947 = vld [vmem:[%s1 + $0x598] sm:$0xff]
    %v948 = vld [vmem:[%s1 + $0x5a0] sm:$0xff]
    %v949 = vld [vmem:[%s1 + $0x5a8] sm:$0xff]
    %v950 = vld [vmem:[%s1 + $0x5b0] sm:$0xff]
    %v951 = vld [vmem:[%s1 + $0x5b8] sm:$0xff]
    %v952 = vld [vmem:[%s1 + $0x5c0] sm:$0xff]
    %v953 = vld [vmem:[%s1 + $0x5c8] sm:$0xff]
    %v954 = vld [vmem:[%s1 + $0x5d0] sm:$0xff]
    %v955 = vld [vmem:[%s1 + $0x5d8] sm:$0xff]
    %v956 = vld [vmem:[%s1 + $0x5e0] sm:$0xff]
    %v957 = vld [vmem:[%s1 + $0x5e8] sm:$0xff]
    %v958 = vld [vmem:[%s1 + $0x5f0] sm:$0xff]
    %v959 = vld [vmem:[%s1 + $0x5f8] sm:$0xff]
    %v960 = vld [vmem:[%s1 + $0x600] sm:$0xff]
    %v961 = vld [vmem:[%s1 + $0x608] sm:$0xff]
    %v962 = vld [vmem:[%s1 + $0x610] sm:$0xff]
    %v963 = vld [vmem:[%s1 + $0x618] sm:$0xff]
    %v964 = vld [vmem:[%s1 + $0x620] sm:$0xff]
    %v965 = vld [vmem:[%s1 + $0x628] sm:$0xff]
    %v966 = vld [vmem:[%s1 + $0x630] sm:$0xff]
    %v967 = vld [vmem:[%s1 + $0x638] sm:$0xff]
    %v968 = vld [vmem:[%s1 + $0x640] sm:$0xff]
    %v969 = vld [vmem:[%s1 + $0x648] sm:$0xff]
    %v970 = vld [vmem:[%s1 + $0x650] sm:$0xff]
    %v971 = vld [vmem:[%s1 + $0x658] sm:$0xff]
    %v972 = vld [vmem:[%s1 + $0x660] sm:$0xff]
    %v973 = vld [vmem:[%s1 + $0x668] sm:$0xff]
    %v974 = vld [vmem:[%s1 + $0x670] sm:$0xff]
    %v975 = vld [vmem:[%s1 + $0x678] sm:$0xff]
    %v976 = vld [vmem:[%s1 + $0x680] sm:$0xff]
    %v977 = vld [vmem:[%s1 + $0x688] sm:$0xff]
    %v978 = vld [vmem:[%s1 + $0x690] sm:$0xff]
    %v979 = vld [vmem:[%s1 + $0x698] sm:$0xff]
    %v980 = vld [vmem:[%s1 + $0x6a0] sm:$0xff]
    %v981 = vld [vmem:[%s1 + $0x6a8] sm:$0xff]
    %v982 = vld [vmem:[%s1 + $0x6b0] sm:$0xff]
    %v983 = vld [vmem:[%s1 + $0x6b8] sm:$0xff]
    %v984 = vld [vmem:[%s1 + $0x6c0] sm:$0xff]
    %v985 = vld [vmem:[%s1 + $0x6c8] sm:$0xff]
    %v986 = vld [vmem:[%s1 + $0x6d0] sm:$0xff]
    %v987 = vld [vmem:[%s1 + $0x6d8] sm:$0xff]
    %v988 = vld [vmem:[%s1 + $0x6e0] sm:$0xff]
    %v989 = vld [vmem:[%s1 + $0x6e8] sm:$0xff]
    %v990 = vld [vmem:[%s1 + $0x6f0] sm:$0xff]
    %v991 = vld [vmem:[%s1 + $0x6f8] sm:$0xff]
    %v992 = vld [vmem:[%s1 + $0x700] sm:$0xff]
    %v993 = vld [vmem:[%s1 + $0x708] sm:$0xff]
    %v994 = vld [vmem:[%s1 + $0x710] sm:$0xff]
    %v995 = vld [vmem:[%s1 + $0x718] sm:$0xff]
    %v996 = vld [vmem:[%s1 + $0x720] sm:$0xff]
    %v997 = vld [vmem:[%s1 + $0x728] sm:$0xff]
    %v998 = vld [vmem:[%s1 + $0x730] sm:$0xff]
    %v999 = vld [vmem:[%s1 + $0x738] sm:$0xff]
    %v1000 = vld [vmem:[%s1 + $0x740] sm:$0xff]
    %v1001 = vld [vmem:[%s1 + $0x748] sm:$0xff]
    %v1002 = vld [vmem:[%s1 + $0x750] sm:$0xff]
    %v1003 = vld [vmem:[%s1 + $0x758] sm:$0xff]
    %v1004 = vld [vmem:[%s1 + $0x760] sm:$0xff]
    %v1005 = vld [vmem:[%s1 + $0x768] sm:$0xff]
    %v1006 = vld [vmem:[%s1 + $0x770] sm:$0xff]
    %v1007 = vld [vmem:[%s1 + $0x778] sm:$0xff]
    %v1008 = vld [vmem:[%s1 + $0x780] sm:$0xff]
    %v1009 = vld [vmem:[%s1 + $0x788] sm:$0xff]
    %v1010 = vld [vmem:[%s1 + $0x790] sm:$0xff]
    %v1011 = vld [vmem:[%s1 + $0x798] sm:$0xff]
    %v1012 = vld [vmem:[%s1 + $0x7a0] sm:$0xff]
    %v1013 = vld [vmem:[%s1 + $0x7a8] sm:$0xff]
    %v1014 = vld [vmem:[%s1 + $0x7b0] sm:$0xff]
    %v1015 = vld [vmem:[%s1 + $0x7b8] sm:$0xff]
    %v1016 = vld [vmem:[%s1 + $0x7c0] sm:$0xff]
    %v1017 = vld [vmem:[%s1 + $0x7c8] sm:$0xff]
    %v1018 = vld [vmem:[%s1 + $0x7d0] sm:$0xff]
    %v1019 = vld [vmem:[%s1 + $0x7d8] sm:$0xff]
    %v1020 = vld [vmem:[%s1 + $0x7e0] sm:$0xff]
    %v1021 = vld [vmem:[%s1 + $0x7e8] sm:$0xff]
    %v1022 = vld [vmem:[%s1 + $0x7f0] sm:$0xff]
    %v1023 = vld [vmem:[%s1 + $0x7f8] sm:$0xff]
    %v1024 = vld [vmem:[%s2] sm:$0x1]
    %v1026 = vperm.slane %v1024, 0
    %vm1060 = vcmask 1041409
    %v1061 = vsel %vm1060, %v572, %v364
    %v1062 = vsel %vm1060, %v585, %v377
    %v1063 = vsel %vm1060, %v598, %v390
    %v1064 = vsel %vm1060, %v611, %v403
    %v1065 = vsel %vm1060, %v624, %v416
    %v1066 = vsel %vm1060, %v637, %v429
    %v1067 = vsel %vm1060, %v650, %v442
    %v1068 = vsel %vm1060, %v663, %v455
    %v1069 = vsel %vm1060, %v676, %v468
    %v1070 = vsel %vm1060, %v689, %v481
    %v1071 = vsel %vm1060, %v702, %v494
    %v1072 = vsel %vm1060, %v715, %v507
    %v1073 = vsel %vm1060, %v728, %v520
    %v1074 = vsel %vm1060, %v741, %v533
    %v1075 = vsel %vm1060, %v754, %v546
    %v1076 = vsel %vm1060, %v767, %v559
    %1093 = vmatpush.msra.mxu0 %v783
    %1094 = vmatpush.msra.mxu0 %v782
    %1095 = vmatpush.msra.mxu0 %v781
    %1096 = vmatpush.msra.mxu0 %v780
    %1097 = vmatpush.msra.mxu0 %v779
    %1098 = vmatpush.msra.mxu0 %v778
    %1099 = vmatpush.msra.mxu0 %v777
    %1100 = vmatpush.msra.mxu0 %v776
    %1101 = vmatpush.msra.mxu0 %v775
    %1102 = vmatpush.msra.mxu0 %v774
    %1103 = vmatpush.msra.mxu0 %v773
    %1104 = vmatpush.msra.mxu0 %v772
    %1105 = vmatpush.msra.mxu0 %v771
    %1106 = vmatpush.msra.mxu0 %v770
    %1107 = vmatpush.msra.mxu0 %v769
    %1108 = vmatpush.msra.mxu0 %v768
    %1109 = vmatmul.f32.gmra.mxu0 %v1061
    %v1110 = vpop.f32.mrf.mxu0
    %v1111 = vadd.f32 %v1026, %v1110
    %1112 = vdwg.mxu0
    %1113 = vmatpush.msra.mxu0 %v799
    %1114 = vmatpush.msra.mxu0 %v798
    %1115 = vmatpush.msra.mxu0 %v797
    %1116 = vmatpush.msra.mxu0 %v796
    %1117 = vmatpush.msra.mxu0 %v795
    %1118 = vmatpush.msra.mxu0 %v794
    %1119 = vmatpush.msra.mxu0 %v793
    %1120 = vmatpush.msra.mxu0 %v792
    %1121 = vmatpush.msra.mxu0 %v791
    %1122 = vmatpush.msra.mxu0 %v790
    %1123 = vmatpush.msra.mxu0 %v789
    %1124 = vmatpush.msra.mxu0 %v788
    %1125 = vmatpush.msra.mxu0 %v787
    %1126 = vmatpush.msra.mxu0 %v786
    %1127 = vmatpush.msra.mxu0 %v785
    %1128 = vmatpush.msra.mxu0 %v784
    %1129 = vmatmul.f32.gmra.mxu0 %v1062
    %v1130 = vpop.f32.mrf.mxu0
    %v1131 = vadd.f32 %v1111, %v1130
    %1132 = vdwg.mxu0
    %1133 = vmatpush.msra.mxu0 %v815
    %1134 = vmatpush.msra.mxu0 %v814
    %1135 = vmatpush.msra.mxu0 %v813
    %1136 = vmatpush.msra.mxu0 %v812
    %1137 = vmatpush.msra.mxu0 %v811
    %1138 = vmatpush.msra.mxu0 %v810
    %1139 = vmatpush.msra.mxu0 %v809
    %1140 = vmatpush.msra.mxu0 %v808
    %1141 = vmatpush.msra.mxu0 %v807
    %1142 = vmatpush.msra.mxu0 %v806
    %1143 = vmatpush.msra.mxu0 %v805
    %1144 = vmatpush.msra.mxu0 %v804
    %1145 = vmatpush.msra.mxu0 %v803
    %1146 = vmatpush.msra.mxu0 %v802
    %1147 = vmatpush.msra.mxu0 %v801
    %1148 = vmatpush.msra.mxu0 %v800
    %1149 = vmatmul.f32.gmra.mxu0 %v1063
    %v1150 = vpop.f32.mrf.mxu0
    %v1151 = vadd.f32 %v1131, %v1150
    %1152 = vdwg.mxu0
    %1153 = vmatpush.msra.mxu0 %v831
    %1154 = vmatpush.msra.mxu0 %v830
    %1155 = vmatpush.msra.mxu0 %v829
    %1156 = vmatpush.msra.mxu0 %v828
    %1157 = vmatpush.msra.mxu0 %v827
    %1158 = vmatpush.msra.mxu0 %v826
    %1159 = vmatpush.msra.mxu0 %v825
    %1160 = vmatpush.msra.mxu0 %v824
    %1161 = vmatpush.msra.mxu0 %v823
    %1162 = vmatpush.msra.mxu0 %v822
    %1163 = vmatpush.msra.mxu0 %v821
    %1164 = vmatpush.msra.mxu0 %v820
    %1165 = vmatpush.msra.mxu0 %v819
    %1166 = vmatpush.msra.mxu0 %v818
    %1167 = vmatpush.msra.mxu0 %v817
    %1168 = vmatpush.msra.mxu0 %v816
    %1169 = vmatmul.f32.gmra.mxu0 %v1064
    %v1170 = vpop.f32.mrf.mxu0
    %v1171 = vadd.f32 %v1151, %v1170
    %1172 = vdwg.mxu0
    %1173 = vmatpush.msra.mxu0 %v847
    %1174 = vmatpush.msra.mxu0 %v846
    %1175 = vmatpush.msra.mxu0 %v845
    %1176 = vmatpush.msra.mxu0 %v844
    %1177 = vmatpush.msra.mxu0 %v843
    %1178 = vmatpush.msra.mxu0 %v842
    %1179 = vmatpush.msra.mxu0 %v841
    %1180 = vmatpush.msra.mxu0 %v840
    %1181 = vmatpush.msra.mxu0 %v839
    %1182 = vmatpush.msra.mxu0 %v838
    %1183 = vmatpush.msra.mxu0 %v837
    %1184 = vmatpush.msra.mxu0 %v836
    %1185 = vmatpush.msra.mxu0 %v835
    %1186 = vmatpush.msra.mxu0 %v834
    %1187 = vmatpush.msra.mxu0 %v833
    %1188 = vmatpush.msra.mxu0 %v832
    %1189 = vmatmul.f32.gmra.mxu0 %v1065
    %v1190 = vpop.f32.mrf.mxu0
    %v1191 = vadd.f32 %v1171, %v1190
    %1192 = vdwg.mxu0
    %1193 = vmatpush.msra.mxu0 %v863
    %1194 = vmatpush.msra.mxu0 %v862
    %1195 = vmatpush.msra.mxu0 %v861
    %1196 = vmatpush.msra.mxu0 %v860
    %1197 = vmatpush.msra.mxu0 %v859
    %1198 = vmatpush.msra.mxu0 %v858
    %1199 = vmatpush.msra.mxu0 %v857
    %1200 = vmatpush.msra.mxu0 %v856
    %1201 = vmatpush.msra.mxu0 %v855
    %1202 = vmatpush.msra.mxu0 %v854
    %1203 = vmatpush.msra.mxu0 %v853
    %1204 = vmatpush.msra.mxu0 %v852
    %1205 = vmatpush.msra.mxu0 %v851
    %1206 = vmatpush.msra.mxu0 %v850
    %1207 = vmatpush.msra.mxu0 %v849
    %1208 = vmatpush.msra.mxu0 %v848
    %1209 = vmatmul.f32.gmra.mxu0 %v1066
    %v1210 = vpop.f32.mrf.mxu0
    %v1211 = vadd.f32 %v1191, %v1210
    %1212 = vdwg.mxu0
    %1213 = vmatpush.msra.mxu0 %v879
    %1214 = vmatpush.msra.mxu0 %v878
    %1215 = vmatpush.msra.mxu0 %v877
    %1216 = vmatpush.msra.mxu0 %v876
    %1217 = vmatpush.msra.mxu0 %v875
    %1218 = vmatpush.msra.mxu0 %v874
    %1219 = vmatpush.msra.mxu0 %v873
    %1220 = vmatpush.msra.mxu0 %v872
    %1221 = vmatpush.msra.mxu0 %v871
    %1222 = vmatpush.msra.mxu0 %v870
    %1223 = vmatpush.msra.mxu0 %v869
    %1224 = vmatpush.msra.mxu0 %v868
    %1225 = vmatpush.msra.mxu0 %v867
    %1226 = vmatpush.msra.mxu0 %v866
    %1227 = vmatpush.msra.mxu0 %v865
    %1228 = vmatpush.msra.mxu0 %v864
    %1229 = vmatmul.f32.gmra.mxu0 %v1067
    %v1230 = vpop.f32.mrf.mxu0
    %v1231 = vadd.f32 %v1211, %v1230
    %1232 = vdwg.mxu0
    %1233 = vmatpush.msra.mxu0 %v895
    %1234 = vmatpush.msra.mxu0 %v894
    %1235 = vmatpush.msra.mxu0 %v893
    %1236 = vmatpush.msra.mxu0 %v892
    %1237 = vmatpush.msra.mxu0 %v891
    %1238 = vmatpush.msra.mxu0 %v890
    %1239 = vmatpush.msra.mxu0 %v889
    %1240 = vmatpush.msra.mxu0 %v888
    %1241 = vmatpush.msra.mxu0 %v887
    %1242 = vmatpush.msra.mxu0 %v886
    %1243 = vmatpush.msra.mxu0 %v885
    %1244 = vmatpush.msra.mxu0 %v884
    %1245 = vmatpush.msra.mxu0 %v883
    %1246 = vmatpush.msra.mxu0 %v882
    %1247 = vmatpush.msra.mxu0 %v881
    %1248 = vmatpush.msra.mxu0 %v880
    %1249 = vmatmul.f32.gmra.mxu0 %v1068
    %v1250 = vpop.f32.mrf.mxu0
    %v1251 = vadd.f32 %v1231, %v1250
    %1252 = vdwg.mxu0
    %1253 = vmatpush.msra.mxu0 %v911
    %1254 = vmatpush.msra.mxu0 %v910
    %1255 = vmatpush.msra.mxu0 %v909
    %1256 = vmatpush.msra.mxu0 %v908
    %1257 = vmatpush.msra.mxu0 %v907
    %1258 = vmatpush.msra.mxu0 %v906
    %1259 = vmatpush.msra.mxu0 %v905
    %1260 = vmatpush.msra.mxu0 %v904
    %1261 = vmatpush.msra.mxu0 %v903
    %1262 = vmatpush.msra.mxu0 %v902
    %1263 = vmatpush.msra.mxu0 %v901
    %1264 = vmatpush.msra.mxu0 %v900
    %1265 = vmatpush.msra.mxu0 %v899
    %1266 = vmatpush.msra.mxu0 %v898
    %1267 = vmatpush.msra.mxu0 %v897
    %1268 = vmatpush.msra.mxu0 %v896
    %1269 = vmatmul.f32.gmra.mxu0 %v1069
    %v1270 = vpop.f32.mrf.mxu0
    %v1271 = vadd.f32 %v1251, %v1270
    %1272 = vdwg.mxu0
    %1273 = vmatpush.msra.mxu0 %v927
    %1274 = vmatpush.msra.mxu0 %v926
    %1275 = vmatpush.msra.mxu0 %v925
    %1276 = vmatpush.msra.mxu0 %v924
    %1277 = vmatpush.msra.mxu0 %v923
    %1278 = vmatpush.msra.mxu0 %v922
    %1279 = vmatpush.msra.mxu0 %v921
    %1280 = vmatpush.msra.mxu0 %v920
    %1281 = vmatpush.msra.mxu0 %v919
    %1282 = vmatpush.msra.mxu0 %v918
    %1283 = vmatpush.msra.mxu0 %v917
    %1284 = vmatpush.msra.mxu0 %v916
    %1285 = vmatpush.msra.mxu0 %v915
    %1286 = vmatpush.msra.mxu0 %v914
    %1287 = vmatpush.msra.mxu0 %v913
    %1288 = vmatpush.msra.mxu0 %v912
    %1289 = vmatmul.f32.gmra.mxu0 %v1070
    %v1290 = vpop.f32.mrf.mxu0
    %v1291 = vadd.f32 %v1271, %v1290
    %1292 = vdwg.mxu0
    %1293 = vmatpush.msra.mxu0 %v943
    %1294 = vmatpush.msra.mxu0 %v942
    %1295 = vmatpush.msra.mxu0 %v941
    %1296 = vmatpush.msra.mxu0 %v940
    %1297 = vmatpush.msra.mxu0 %v939
    %1298 = vmatpush.msra.mxu0 %v938
    %1299 = vmatpush.msra.mxu0 %v937
    %1300 = vmatpush.msra.mxu0 %v936
    %1301 = vmatpush.msra.mxu0 %v935
    %1302 = vmatpush.msra.mxu0 %v934
    %1303 = vmatpush.msra.mxu0 %v933
    %1304 = vmatpush.msra.mxu0 %v932
    %1305 = vmatpush.msra.mxu0 %v931
    %1306 = vmatpush.msra.mxu0 %v930
    %1307 = vmatpush.msra.mxu0 %v929
    %1308 = vmatpush.msra.mxu0 %v928
    %1309 = vmatmul.f32.gmra.mxu0 %v1071
    %v1310 = vpop.f32.mrf.mxu0
    %v1311 = vadd.f32 %v1291, %v1310
    %1312 = vdwg.mxu0
    %1313 = vmatpush.msra.mxu0 %v959
    %1314 = vmatpush.msra.mxu0 %v958
    %1315 = vmatpush.msra.mxu0 %v957
    %1316 = vmatpush.msra.mxu0 %v956
    %1317 = vmatpush.msra.mxu0 %v955
    %1318 = vmatpush.msra.mxu0 %v954
    %1319 = vmatpush.msra.mxu0 %v953
    %1320 = vmatpush.msra.mxu0 %v952
    %1321 = vmatpush.msra.mxu0 %v951
    %1322 = vmatpush.msra.mxu0 %v950
    %1323 = vmatpush.msra.mxu0 %v949
    %1324 = vmatpush.msra.mxu0 %v948
    %1325 = vmatpush.msra.mxu0 %v947
    %1326 = vmatpush.msra.mxu0 %v946
    %1327 = vmatpush.msra.mxu0 %v945
    %1328 = vmatpush.msra.mxu0 %v944
    %1329 = vmatmul.f32.gmra.mxu0 %v1072
    %v1330 = vpop.f32.mrf.mxu0
    %v1331 = vadd.f32 %v1311, %v1330
    %1332 = vdwg.mxu0
    %1333 = vmatpush.msra.mxu0 %v975
    %1334 = vmatpush.msra.mxu0 %v974
    %1335 = vmatpush.msra.mxu0 %v973
    %1336 = vmatpush.msra.mxu0 %v972
    %1337 = vmatpush.msra.mxu0 %v971
    %1338 = vmatpush.msra.mxu0 %v970
    %1339 = vmatpush.msra.mxu0 %v969
    %1340 = vmatpush.msra.mxu0 %v968
    %1341 = vmatpush.msra.mxu0 %v967
    %1342 = vmatpush.msra.mxu0 %v966
    %1343 = vmatpush.msra.mxu0 %v965
    %1344 = vmatpush.msra.mxu0 %v964
    %1345 = vmatpush.msra.mxu0 %v963
    %1346 = vmatpush.msra.mxu0 %v962
    %1347 = vmatpush.msra.mxu0 %v961
    %1348 = vmatpush.msra.mxu0 %v960
    %1349 = vmatmul.f32.gmra.mxu0 %v1073
    %v1350 = vpop.f32.mrf.mxu0
    %v1351 = vadd.f32 %v1331, %v1350
    %1352 = vdwg.mxu0
    %1353 = vmatpush.msra.mxu0 %v991
    %1354 = vmatpush.msra.mxu0 %v990
    %1355 = vmatpush.msra.mxu0 %v989
    %1356 = vmatpush.msra.mxu0 %v988
    %1357 = vmatpush.msra.mxu0 %v987
    %1358 = vmatpush.msra.mxu0 %v986
    %1359 = vmatpush.msra.mxu0 %v985
    %1360 = vmatpush.msra.mxu0 %v984
    %1361 = vmatpush.msra.mxu0 %v983
    %1362 = vmatpush.msra.mxu0 %v982
    %1363 = vmatpush.msra.mxu0 %v981
    %1364 = vmatpush.msra.mxu0 %v980
    %1365 = vmatpush.msra.mxu0 %v979
    %1366 = vmatpush.msra.mxu0 %v978
    %1367 = vmatpush.msra.mxu0 %v977
    %1368 = vmatpush.msra.mxu0 %v976
    %1369 = vmatmul.f32.gmra.mxu0 %v1074
    %v1370 = vpop.f32.mrf.mxu0
    %v1371 = vadd.f32 %v1351, %v1370
    %1372 = vdwg.mxu0
    %1373 = vmatpush.msra.mxu0 %v1007
    %1374 = vmatpush.msra.mxu0 %v1006
    %1375 = vmatpush.msra.mxu0 %v1005
    %1376 = vmatpush.msra.mxu0 %v1004
    %1377 = vmatpush.msra.mxu0 %v1003
    %1378 = vmatpush.msra.mxu0 %v1002
    %1379 = vmatpush.msra.mxu0 %v1001
    %1380 = vmatpush.msra.mxu0 %v1000
    %1381 = vmatpush.msra.mxu0 %v999
    %1382 = vmatpush.msra.mxu0 %v998
    %1383 = vmatpush.msra.mxu0 %v997
    %1384 = vmatpush.msra.mxu0 %v996
    %1385 = vmatpush.msra.mxu0 %v995
    %1386 = vmatpush.msra.mxu0 %v994
    %1387 = vmatpush.msra.mxu0 %v993
    %1388 = vmatpush.msra.mxu0 %v992
    %1389 = vmatmul.f32.gmra.mxu0 %v1075
    %v1390 = vpop.f32.mrf.mxu0
    %v1391 = vadd.f32 %v1371, %v1390
    %1392 = vdwg.mxu0
    %1393 = vmatpush.msra.mxu0 %v1023
    %1394 = vmatpush.msra.mxu0 %v1022
    %1395 = vmatpush.msra.mxu0 %v1021
    %1396 = vmatpush.msra.mxu0 %v1020
    %1397 = vmatpush.msra.mxu0 %v1019
    %1398 = vmatpush.msra.mxu0 %v1018
    %1399 = vmatpush.msra.mxu0 %v1017
    %1400 = vmatpush.msra.mxu0 %v1016
    %1401 = vmatpush.msra.mxu0 %v1015
    %1402 = vmatpush.msra.mxu0 %v1014
    %1403 = vmatpush.msra.mxu0 %v1013
    %1404 = vmatpush.msra.mxu0 %v1012
    %1405 = vmatpush.msra.mxu0 %v1011
    %1406 = vmatpush.msra.mxu0 %v1010
    %1407 = vmatpush.msra.mxu0 %v1009
    %1408 = vmatpush.msra.mxu0 %v1008
    %1409 = vmatmul.f32.gmra.mxu0 %v1076
    %v1410 = vpop.f32.mrf.mxu0
    %v1411 = vadd.f32 %v1391, %v1410
    %1412 = vdwg.mxu0
    %vm1413 = vcmask 123904
    %1414 = vst.msk [vmem:[#allocation2] sm:$0x3] %vm1413, %v1411
    // Predicated region
    $region14: #{tpu_custom_call.1} parent=1 // pred_check
      _
    $region15: #{tpu_custom_call.1} parent=1 // pred_check_branch
      %1416 = sbr.rel (0) target = $region17
    $region16: #{tpu_custom_call.1} parent=1 // pred_region
      %1418 = vsyncadd [#allocation3], 0
      %s1420 = sshll.u32 [#allocation2], 4
      %s1421 = int_to_ptr.vmem [resolvable:$true] %s1420
      %s1422 = sshll.u32 %s3, 4
      %s1423 = int_to_ptr.hbm [resolvable:$true] %s1422
      %1425 = dma.vmem_to_hbm [thread:$0]  %s1421, 32, %s1423, [#allocation3]
    $region17: #{tpu_custom_call.1} parent=1 // pred_fallthru
      _
    // Predicated region
    $region18: #{tpu_custom_call.1} parent=1 // pred_check
      _
    $region19: #{tpu_custom_call.1} parent=1 // pred_check_branch
      %1427 = sbr.rel (0) target = $region21
    $region20: #{tpu_custom_call.1} parent=1 // pred_region
      %1429 = dma.done [#allocation3], 32
    $region21: #{tpu_custom_call.1} parent=1 // pred_fallthru
      _
    %1430 = vsyncpa [#allocation3], 1

</llo_original>
